<compile_context>
chip_gen: v7x
topology: tpu7x:2x2x1
jax: 0.10.0
libtpu: 0.0.40
codegen_flags: <defaults>
</compile_context>

<pallas_src>
import numpy as np
import jax
import jax.numpy as jnp
from jax.experimental import pallas as pl
from jax.experimental.pallas import tpu as pltpu

# ----------------------------- model hyper-params ---------------------------
IN_FEATURES = 10        # input column count; x = input[:, :-1], t = input[:, -1:]
ENCODED = 16            # encoded_features
OUT_FEATURES = 1        # out_features
BATCH = 8

PSI_PAD = 32            # common padded width for the small psi-MLP matrices
SURV_W = 128            # surv_net hidden width


def _leaky_relu(x, slope=0.01):
    return jnp.where(x > 0, x, slope * x)


def _relu(x):
    return jnp.maximum(x, 0.0)


# ------------------------------- Pallas kernel ------------------------------
def netcfrsurv_kernel(x_ref, t_ref, psi_w_ref, psi_b_ref, sw1_ref,
                      surv_w_ref, surv_b_ref, phi_ref, psit_ref):
    # x_ref:    (TM, 32)   x zero-padded to 32 lanes
    # t_ref:    (TM, 1)
    # psi_w_ref:(4, 32, 32) pw1..pw4 zero-padded
    # psi_b_ref:(4, 1, 32)  pb1..pb4 zero-padded
    # sw1_ref:  (32, 128)   sw1[:E] zero-padded along K
    # surv_w_ref:(3,128,128) [sw2, sw3 (BN1-folded), sw4 (BN2-folded, padded)]
    # surv_b_ref:(7,1,128)  [sb1, sb2, sb3', sb4'(pad), sw1_t, sw5^T(pad), sb5(pad)]
    E = psit_ref.shape[1] - 1

    x = x_ref[...]
    t = t_ref[...]

    def lin(h, w, b):
        return jnp.dot(h, w, preferred_element_type=jnp.float32) + b

    # --- psi encoder (all weights zero-padded to 32x32; pads contribute 0) ---
    h = _leaky_relu(lin(x, psi_w_ref[0], psi_b_ref[0]))
    h = _relu(lin(h, psi_w_ref[1], psi_b_ref[1]))
    h = _leaky_relu(lin(h, psi_w_ref[2], psi_b_ref[2]))
    psi32 = lin(h, psi_w_ref[3], psi_b_ref[3])        # (TM, 32), cols E..31 == 0

    # --- psi_t built in registers, one store ---
    psit_ref[...] = jnp.concatenate([psi32[:, :E], t], axis=1)

    # --- surv_net ---
    # Layer 1 split: K=32 matmul on padded psi + rank-1 VPU update for t.
    h = _leaky_relu(
        jnp.dot(psi32, sw1_ref[...], preferred_element_type=jnp.float32)
        + t * surv_b_ref[4] + surv_b_ref[0])
    h = _relu(lin(h, surv_w_ref[0], surv_b_ref[1]))       # Linear(128,128); BN1 folded into next
    h = _leaky_relu(lin(h, surv_w_ref[1], surv_b_ref[2])) # Linear(128,128) (BN1-folded); BN2 folded into next
    h = _relu(lin(h, surv_w_ref[2], surv_b_ref[3]))       # Linear(128,50) (BN2-folded), padded 50->128
    # Final Linear(50,1): sw5^T packed as a bias-slab row; lane reduction.
    phi_ref[...] = (jnp.sum(h * surv_b_ref[5], axis=-1, keepdims=True)
                    + surv_b_ref[6][:, :1])


# --------------------------- parameter packing -------------------------------
def _pad_to(a, shape):
    return jnp.pad(a, [(0, s - d) for d, s in zip(a.shape, shape)])


def pack_params(p):
    """Fold BN, split sw1, zero-pad, and pack the 22 raw params into 5 slabs."""
    (pw1, pb1, pw2, pb2, pw3, pb3, pw4, pb4,
     sw1, sb1, sw2, sb2, bn1s, bn1h, sw3, sb3, bn2s, bn2h,
     sw4, sb4, sw5, sb5) = p

    E = pw4.shape[1]

    psi_w = jnp.stack([
        _pad_to(pw1, (PSI_PAD, PSI_PAD)),
        _pad_to(pw2, (PSI_PAD, PSI_PAD)),
        _pad_to(pw3, (PSI_PAD, PSI_PAD)),
        _pad_to(pw4, (PSI_PAD, PSI_PAD)),
    ])
    psi_b = jnp.stack([
        _pad_to(pb1, (1, PSI_PAD)),
        _pad_to(pb2, (1, PSI_PAD)),
        _pad_to(pb3, (1, PSI_PAD)),
        _pad_to(pb4, (1, PSI_PAD)),
    ])

    # Split Linear(E+1,128): rows 0..E-1 act on psi, row E acts on t (rank-1).
    sw1_psi = _pad_to(sw1[:E], (PSI_PAD, SURV_W))
    sw1_t = sw1[E:E + 1]                                   # (1, 128)

    # Fold eval-mode BN (y*scale + shift) into the FOLLOWING Linear (exact,
    # sign-safe because no activation sits between BN and the next Linear):
    #   (y*s + h) @ W + b == y @ (s^T * W) + (b + h @ W)
    sw3f = bn1s.reshape(-1, 1) * sw3
    sb3f = sb3 + bn1h @ sw3
    sw4f = bn2s.reshape(-1, 1) * sw4
    sb4f = sb4 + bn2h @ sw4

    surv_w = jnp.stack([sw2, sw3f, _pad_to(sw4f, (SURV_W, SURV_W))])
    surv_b = jnp.stack([
        sb1,
        sb2,
        sb3f,
        _pad_to(sb4f, (1, SURV_W)),
        sw1_t,
        _pad_to(sw5.T, (1, SURV_W)),   # final Linear(50,1) weight as a row
        _pad_to(sb5, (1, SURV_W)),     # final bias at lane 0
    ])
    return psi_w, psi_b, sw1_psi, surv_w, surv_b


# ------------------------------- wrapper -------------------------------------
def netcfrsurv_forward(inp, packed, *, max_tile=512):
    psi_w, psi_b, sw1_psi, surv_w, surv_b = packed
    N, F = inp.shape

    # Split x/t and pad x on the XLA side (fused, keeps kernel layouts clean).
    x = inp[:, :F - 1]
    t = inp[:, F - 1:]
    x_pad = jnp.pad(x, ((0, 0), (0, PSI_PAD - (F - 1))))

    TM = N if N <= max_tile else max_tile
    grid = (pl.cdiv(N, TM),)

    flops = 2 * N * (4 * PSI_PAD * PSI_PAD + PSI_PAD * SURV_W
                     + 3 * SURV_W * SURV_W + SURV_W)
    bytes_accessed = 4 * (x_pad.size + t.size + psi_w.size + psi_b.size
                          + sw1_psi.size + surv_w.size + surv_b.size
                          + N * (OUT_FEATURES + ENCODED + 1))
    cost = pl.CostEstimate(flops=flops, transcendentals=0,
                           bytes_accessed=bytes_accessed)

    phi, psi_t = pl.pallas_call(
        netcfrsurv_kernel,
        out_shape=(jax.ShapeDtypeStruct((N, OUT_FEATURES), jnp.float32),
                   jax.ShapeDtypeStruct((N, ENCODED + 1), jnp.float32)),
        grid=grid,
        in_specs=[
            pl.BlockSpec((TM, PSI_PAD), lambda i: (i, 0)),
            pl.BlockSpec((TM, 1), lambda i: (i, 0)),
            pl.BlockSpec((4, PSI_PAD, PSI_PAD), lambda i: (0, 0, 0)),
            pl.BlockSpec((4, 1, PSI_PAD), lambda i: (0, 0, 0)),
            pl.BlockSpec((PSI_PAD, SURV_W), lambda i: (0, 0)),
            pl.BlockSpec((3, SURV_W, SURV_W), lambda i: (0, 0, 0)),
            pl.BlockSpec((7, 1, SURV_W), lambda i: (0, 0, 0)),
        ],
        out_specs=(
            pl.BlockSpec((TM, OUT_FEATURES), lambda i: (i, 0)),
            pl.BlockSpec((TM, ENCODED + 1), lambda i: (i, 0)),
        ),
        compiler_params=pltpu.CompilerParams(
            dimension_semantics=("parallel",)),
        cost_estimate=cost,
    )(x_pad, t, psi_w, psi_b, sw1_psi, surv_w, surv_b)
    return phi, psi_t


# --------------------------- parameter construction --------------------------
def init_linear(key, fan_in, fan_out):
    """PyTorch-style uniform init; weight returned pre-transposed (in, out)."""
    k1, k2 = jax.random.split(key)
    bound = 1.0 / np.sqrt(fan_in)
    w = jax.random.uniform(k1, (fan_in, fan_out), jnp.float32, -bound, bound)
    b = jax.random.uniform(k2, (1, fan_out), jnp.float32, -bound, bound)
    return w, b


def build_params(key):
    ks = jax.random.split(key, 9)
    # psi
    pw1, pb1 = init_linear(ks[0], IN_FEATURES - 1, 32)
    pw2, pb2 = init_linear(ks[1], 32, 32)
    pw3, pb3 = init_linear(ks[2], 32, 28)
    pw4, pb4 = init_linear(ks[3], 28, ENCODED)
    # surv_net
    sw1, sb1 = init_linear(ks[4], ENCODED + 1, 128)
    sw2, sb2 = init_linear(ks[5], 128, 128)
    sw3, sb3 = init_linear(ks[6], 128, 128)
    sw4, sb4 = init_linear(ks[7], 128, 50)
    sw5, sb5 = init_linear(ks[8], 50, OUT_FEATURES)
    # BatchNorm1d (PyTorch defaults): gamma=1, beta=0, running_mean=0, running_var=1
    eps = 1e-5
    gamma = jnp.ones((1, 128), jnp.float32)
    beta = jnp.zeros((1, 128), jnp.float32)
    rmean = jnp.zeros((1, 128), jnp.float32)
    rvar = jnp.ones((1, 128), jnp.float32)
    scale = gamma / jnp.sqrt(rvar + eps)
    shift = beta - rmean * scale
    bn1s, bn1h = scale, shift
    bn2s, bn2h = scale, shift
    return [
        pw1, pb1, pw2, pb2, pw3, pb3, pw4, pb4,
        sw1, sb1, sw2, sb2, bn1s, bn1h, sw3, sb3, bn2s, bn2h, sw4, sb4, sw5, sb5,
    ]


# ------------------------------ pure-JAX reference ---------------------------
def ref_forward(inp, p):
    (pw1, pb1, pw2, pb2, pw3, pb3, pw4, pb4,
     sw1, sb1, sw2, sb2, bn1s, bn1h, sw3, sb3, bn2s, bn2h, sw4, sb4, sw5, sb5) = p
    x, t = inp[:, :-1], inp[:, -1:]
    h = _leaky_relu(x @ pw1 + pb1)
    h = _relu(h @ pw2 + pb2)
    h = _leaky_relu(h @ pw3 + pb3)
    psi = h @ pw4 + pb4
    psi_t = jnp.concatenate([psi, t], axis=1)
    h = _leaky_relu(psi_t @ sw1 + sb1)
    h = _relu(h @ sw2 + sb2)
    h = h * bn1s + bn1h
    h = _leaky_relu(h @ sw3 + sb3)
    h = h * bn2s + bn2h
    h = _relu(h @ sw4 + sb4)
    phi = h @ sw5 + sb5
    return phi, psi_t


# ----------------------------------- main ------------------------------------
if __name__ == "__main__":
    key = jax.random.PRNGKey(0)
    k_inp, k_par = jax.random.split(key)
    inp = jax.random.normal(k_inp, (BATCH, IN_FEATURES), jnp.float32)
    params = build_params(k_par)
    packed = pack_params(params)

    phi, psi_t = netcfrsurv_forward(inp, packed)
    jax.block_until_ready((phi, psi_t))

    phi_ref, psit_ref = ref_forward(inp, params)
    np.testing.assert_allclose(np.asarray(phi), np.asarray(phi_ref),
                               rtol=1e-4, atol=1e-5)
    np.testing.assert_allclose(np.asarray(psi_t), np.asarray(psit_ref),
                               rtol=1e-4, atol=1e-5)

    print("KERNEL_OK")
</pallas_src>

<mosaic_0001>
module attributes {stable_mosaic.version = 11 : i64} {
  func.func @netcfrsurv_kernel(%arg0: i32, %arg1: memref<8x32xf32, #tpu.memory_space<vmem>>, %arg2: memref<8x1xf32, #tpu.memory_space<vmem>>, %arg3: memref<4x32x32xf32, #tpu.memory_space<vmem>>, %arg4: memref<4x1x32xf32, #tpu.memory_space<vmem>>, %arg5: memref<32x128xf32, #tpu.memory_space<vmem>>, %arg6: memref<3x128x128xf32, #tpu.memory_space<vmem>>, %arg7: memref<7x1x128xf32, #tpu.memory_space<vmem>>, %arg8: memref<8x1xf32, #tpu.memory_space<vmem>>, %arg9: memref<8x17xf32, #tpu.memory_space<vmem>>) attributes {dimension_semantics = [#tpu.dimension_semantics<parallel>], iteration_bounds = array<i64: 1>, scalar_prefetch = 0 : i64, scratch_operands = 0 : i64, tpu.core_type = #tpu.core_type<tc>, window_params = [{transform_indices = @transform_0, window_bounds = array<i64: 8, 32>}, {transform_indices = @transform_1, window_bounds = array<i64: 8, 1>}, {pipeline_mode = #tpu.pipeline_mode<synchronous>, transform_indices = @transform_2, window_bounds = array<i64: 4, 32, 32>}, {pipeline_mode = #tpu.pipeline_mode<synchronous>, transform_indices = @transform_3, window_bounds = array<i64: 4, 1, 32>}, {pipeline_mode = #tpu.pipeline_mode<synchronous>, transform_indices = @transform_4, window_bounds = array<i64: 32, 128>}, {pipeline_mode = #tpu.pipeline_mode<synchronous>, transform_indices = @transform_5, window_bounds = array<i64: 3, 128, 128>}, {pipeline_mode = #tpu.pipeline_mode<synchronous>, transform_indices = @transform_6, window_bounds = array<i64: 7, 1, 128>}, {transform_indices = @transform_7, window_bounds = array<i64: 8, 1>}, {transform_indices = @transform_8, window_bounds = array<i64: 8, 17>}]} {
    %c0 = arith.constant 0 : index
    %c0_0 = arith.constant 0 : index
    %0 = vector.load %arg1[%c0, %c0_0] : memref<8x32xf32, #tpu.memory_space<vmem>>, vector<8x32xf32>
    %c0_1 = arith.constant 0 : index
    %c0_2 = arith.constant 0 : index
    %1 = vector.load %arg2[%c0_1, %c0_2] : memref<8x1xf32, #tpu.memory_space<vmem>>, vector<8x1xf32>
    %c0_3 = arith.constant 0 : index
    %c0_4 = arith.constant 0 : index
    %c0_5 = arith.constant 0 : index
    %2 = vector.load %arg3[%c0_3, %c0_4, %c0_5] : memref<4x32x32xf32, #tpu.memory_space<vmem>>, vector<1x32x32xf32>
    %3 = vector.shape_cast %2 : vector<1x32x32xf32> to vector<32x32xf32>
    %c0_6 = arith.constant 0 : index
    %c0_7 = arith.constant 0 : index
    %c0_8 = arith.constant 0 : index
    %4 = vector.load %arg4[%c0_6, %c0_7, %c0_8] : memref<4x1x32xf32, #tpu.memory_space<vmem>>, vector<1x1x32xf32>
    %5 = vector.shape_cast %4 : vector<1x1x32xf32> to vector<1x32xf32>
    %cst = arith.constant dense<0.000000e+00> : vector<8x32xf32>
    %6 = tpu.matmul %0, %3, %cst {dimension_numbers = #tpu.dot_dimension_numbers<[1], [0], [0], [1], [0, 0, 1, 1], [], []>} : vector<8x32xf32>, vector<32x32xf32>, vector<8x32xf32> -> vector<8x32xf32>
    %7 = vector.broadcast %5 : vector<1x32xf32> to vector<8x32xf32>
    %8 = arith.addf %6, %7 : vector<8x32xf32>
    %cst_9 = arith.constant 0.000000e+00 : f32
    %9 = vector.broadcast %cst_9 : f32 to vector<8x32xf32>
    %10 = arith.cmpf ogt, %8, %9 : vector<8x32xf32>
    %cst_10 = arith.constant 0.00999999977 : f32
    %11 = vector.broadcast %cst_10 : f32 to vector<8x32xf32>
    %12 = arith.mulf %11, %8 : vector<8x32xf32>
    %13 = arith.select %10, %8, %12 : vector<8x32xi1>, vector<8x32xf32>
    %c1 = arith.constant 1 : index
    %c0_11 = arith.constant 0 : index
    %c0_12 = arith.constant 0 : index
    %14 = vector.load %arg3[%c1, %c0_11, %c0_12] : memref<4x32x32xf32, #tpu.memory_space<vmem>>, vector<1x32x32xf32>
    %15 = vector.shape_cast %14 : vector<1x32x32xf32> to vector<32x32xf32>
    %c1_13 = arith.constant 1 : index
    %c0_14 = arith.constant 0 : index
    %c0_15 = arith.constant 0 : index
    %16 = vector.load %arg4[%c1_13, %c0_14, %c0_15] : memref<4x1x32xf32, #tpu.memory_space<vmem>>, vector<1x1x32xf32>
    %17 = vector.shape_cast %16 : vector<1x1x32xf32> to vector<1x32xf32>
    %cst_16 = arith.constant dense<0.000000e+00> : vector<8x32xf32>
    %18 = tpu.matmul %13, %15, %cst_16 {dimension_numbers = #tpu.dot_dimension_numbers<[1], [0], [0], [1], [0, 0, 1, 1], [], []>} : vector<8x32xf32>, vector<32x32xf32>, vector<8x32xf32> -> vector<8x32xf32>
    %19 = vector.broadcast %17 : vector<1x32xf32> to vector<8x32xf32>
    %20 = arith.addf %18, %19 : vector<8x32xf32>
    %cst_17 = arith.constant 0.000000e+00 : f32
    %21 = vector.broadcast %cst_17 : f32 to vector<8x32xf32>
    %22 = arith.maximumf %20, %21 : vector<8x32xf32>
    %c2 = arith.constant 2 : index
    %c0_18 = arith.constant 0 : index
    %c0_19 = arith.constant 0 : index
    %23 = vector.load %arg3[%c2, %c0_18, %c0_19] : memref<4x32x32xf32, #tpu.memory_space<vmem>>, vector<1x32x32xf32>
    %24 = vector.shape_cast %23 : vector<1x32x32xf32> to vector<32x32xf32>
    %c2_20 = arith.constant 2 : index
    %c0_21 = arith.constant 0 : index
    %c0_22 = arith.constant 0 : index
    %25 = vector.load %arg4[%c2_20, %c0_21, %c0_22] : memref<4x1x32xf32, #tpu.memory_space<vmem>>, vector<1x1x32xf32>
    %26 = vector.shape_cast %25 : vector<1x1x32xf32> to vector<1x32xf32>
    %cst_23 = arith.constant dense<0.000000e+00> : vector<8x32xf32>
    %27 = tpu.matmul %22, %24, %cst_23 {dimension_numbers = #tpu.dot_dimension_numbers<[1], [0], [0], [1], [0, 0, 1, 1], [], []>} : vector<8x32xf32>, vector<32x32xf32>, vector<8x32xf32> -> vector<8x32xf32>
    %28 = vector.broadcast %26 : vector<1x32xf32> to vector<8x32xf32>
    %29 = arith.addf %27, %28 : vector<8x32xf32>
    %cst_24 = arith.constant 0.000000e+00 : f32
    %30 = vector.broadcast %cst_24 : f32 to vector<8x32xf32>
    %31 = arith.cmpf ogt, %29, %30 : vector<8x32xf32>
    %cst_25 = arith.constant 0.00999999977 : f32
    %32 = vector.broadcast %cst_25 : f32 to vector<8x32xf32>
    %33 = arith.mulf %32, %29 : vector<8x32xf32>
    %34 = arith.select %31, %29, %33 : vector<8x32xi1>, vector<8x32xf32>
    %c3 = arith.constant 3 : index
    %c0_26 = arith.constant 0 : index
    %c0_27 = arith.constant 0 : index
    %35 = vector.load %arg3[%c3, %c0_26, %c0_27] : memref<4x32x32xf32, #tpu.memory_space<vmem>>, vector<1x32x32xf32>
    %36 = vector.shape_cast %35 : vector<1x32x32xf32> to vector<32x32xf32>
    %c3_28 = arith.constant 3 : index
    %c0_29 = arith.constant 0 : index
    %c0_30 = arith.constant 0 : index
    %37 = vector.load %arg4[%c3_28, %c0_29, %c0_30] : memref<4x1x32xf32, #tpu.memory_space<vmem>>, vector<1x1x32xf32>
    %38 = vector.shape_cast %37 : vector<1x1x32xf32> to vector<1x32xf32>
    %cst_31 = arith.constant dense<0.000000e+00> : vector<8x32xf32>
    %39 = tpu.matmul %34, %36, %cst_31 {dimension_numbers = #tpu.dot_dimension_numbers<[1], [0], [0], [1], [0, 0, 1, 1], [], []>} : vector<8x32xf32>, vector<32x32xf32>, vector<8x32xf32> -> vector<8x32xf32>
    %40 = vector.broadcast %38 : vector<1x32xf32> to vector<8x32xf32>
    %41 = arith.addf %39, %40 : vector<8x32xf32>
    %42 = vector.extract_strided_slice %41 {offsets = [0, 0], sizes = [8, 16], strides = [1, 1]} : vector<8x32xf32> to vector<8x16xf32>
    %43 = tpu.concatenate %42, %1 in 1 : vector<8x16xf32>, vector<8x1xf32> -> vector<8x17xf32>
    %c0_32 = arith.constant 0 : index
    %c0_33 = arith.constant 0 : index
    %44 = vector.load %arg9[%c0_32, %c0_33] : memref<8x17xf32, #tpu.memory_space<vmem>>, vector<8x17xf32>
    tpu.vector_store %arg9[%c0_32, %c0_33], %43 {strides = array<i32>} : memref<8x17xf32, #tpu.memory_space<vmem>>, vector<8x17xf32>,
    %c0_34 = arith.constant 0 : index
    %c0_35 = arith.constant 0 : index
    %45 = vector.load %arg5[%c0_34, %c0_35] : memref<32x128xf32, #tpu.memory_space<vmem>>, vector<32x128xf32>
    %cst_36 = arith.constant dense<0.000000e+00> : vector<8x128xf32>
    %46 = tpu.matmul %41, %45, %cst_36 {dimension_numbers = #tpu.dot_dimension_numbers<[1], [0], [0], [1], [0, 0, 1, 1], [], []>} : vector<8x32xf32>, vector<32x128xf32>, vector<8x128xf32> -> vector<8x128xf32>
    %c4 = arith.constant 4 : index
    %c0_37 = arith.constant 0 : index
    %c0_38 = arith.constant 0 : index
    %47 = vector.load %arg7[%c4, %c0_37, %c0_38] : memref<7x1x128xf32, #tpu.memory_space<vmem>>, vector<1x1x128xf32>
    %48 = vector.shape_cast %47 : vector<1x1x128xf32> to vector<1x128xf32>
    %49 = vector.broadcast %1 : vector<8x1xf32> to vector<8x128xf32>
    %50 = vector.broadcast %48 : vector<1x128xf32> to vector<8x128xf32>
    %51 = arith.mulf %49, %50 : vector<8x128xf32>
    %52 = arith.addf %46, %51 : vector<8x128xf32>
    %c0_39 = arith.constant 0 : index
    %c0_40 = arith.constant 0 : index
    %c0_41 = arith.constant 0 : index
    %53 = vector.load %arg7[%c0_39, %c0_40, %c0_41] : memref<7x1x128xf32, #tpu.memory_space<vmem>>, vector<1x1x128xf32>
    %54 = vector.shape_cast %53 : vector<1x1x128xf32> to vector<1x128xf32>
    %55 = vector.broadcast %54 : vector<1x128xf32> to vector<8x128xf32>
    %56 = arith.addf %52, %55 : vector<8x128xf32>
    %cst_42 = arith.constant 0.000000e+00 : f32
    %57 = vector.broadcast %cst_42 : f32 to vector<8x128xf32>
    %58 = arith.cmpf ogt, %56, %57 : vector<8x128xf32>
    %cst_43 = arith.constant 0.00999999977 : f32
    %59 = vector.broadcast %cst_43 : f32 to vector<8x128xf32>
    %60 = arith.mulf %59, %56 : vector<8x128xf32>
    %61 = arith.select %58, %56, %60 : vector<8x128xi1>, vector<8x128xf32>
    %c0_44 = arith.constant 0 : index
    %c0_45 = arith.constant 0 : index
    %c0_46 = arith.constant 0 : index
    %62 = vector.load %arg6[%c0_44, %c0_45, %c0_46] : memref<3x128x128xf32, #tpu.memory_space<vmem>>, vector<1x128x128xf32>
    %63 = vector.shape_cast %62 : vector<1x128x128xf32> to vector<128x128xf32>
    %c1_47 = arith.constant 1 : index
    %c0_48 = arith.constant 0 : index
    %c0_49 = arith.constant 0 : index
    %64 = vector.load %arg7[%c1_47, %c0_48, %c0_49] : memref<7x1x128xf32, #tpu.memory_space<vmem>>, vector<1x1x128xf32>
    %65 = vector.shape_cast %64 : vector<1x1x128xf32> to vector<1x128xf32>
    %cst_50 = arith.constant dense<0.000000e+00> : vector<8x128xf32>
    %66 = tpu.matmul %61, %63, %cst_50 {dimension_numbers = #tpu.dot_dimension_numbers<[1], [0], [0], [1], [0, 0, 1, 1], [], []>} : vector<8x128xf32>, vector<128x128xf32>, vector<8x128xf32> -> vector<8x128xf32>
    %67 = vector.broadcast %65 : vector<1x128xf32> to vector<8x128xf32>
    %68 = arith.addf %66, %67 : vector<8x128xf32>
    %cst_51 = arith.constant 0.000000e+00 : f32
    %69 = vector.broadcast %cst_51 : f32 to vector<8x128xf32>
    %70 = arith.maximumf %68, %69 : vector<8x128xf32>
    %c1_52 = arith.constant 1 : index
    %c0_53 = arith.constant 0 : index
    %c0_54 = arith.constant 0 : index
    %71 = vector.load %arg6[%c1_52, %c0_53, %c0_54] : memref<3x128x128xf32, #tpu.memory_space<vmem>>, vector<1x128x128xf32>
    %72 = vector.shape_cast %71 : vector<1x128x128xf32> to vector<128x128xf32>
    %c2_55 = arith.constant 2 : index
    %c0_56 = arith.constant 0 : index
    %c0_57 = arith.constant 0 : index
    %73 = vector.load %arg7[%c2_55, %c0_56, %c0_57] : memref<7x1x128xf32, #tpu.memory_space<vmem>>, vector<1x1x128xf32>
    %74 = vector.shape_cast %73 : vector<1x1x128xf32> to vector<1x128xf32>
    %cst_58 = arith.constant dense<0.000000e+00> : vector<8x128xf32>
    %75 = tpu.matmul %70, %72, %cst_58 {dimension_numbers = #tpu.dot_dimension_numbers<[1], [0], [0], [1], [0, 0, 1, 1], [], []>} : vector<8x128xf32>, vector<128x128xf32>, vector<8x128xf32> -> vector<8x128xf32>
    %76 = vector.broadcast %74 : vector<1x128xf32> to vector<8x128xf32>
    %77 = arith.addf %75, %76 : vector<8x128xf32>
    %cst_59 = arith.constant 0.000000e+00 : f32
    %78 = vector.broadcast %cst_59 : f32 to vector<8x128xf32>
    %79 = arith.cmpf ogt, %77, %78 : vector<8x128xf32>
    %cst_60 = arith.constant 0.00999999977 : f32
    %80 = vector.broadcast %cst_60 : f32 to vector<8x128xf32>
    %81 = arith.mulf %80, %77 : vector<8x128xf32>
    %82 = arith.select %79, %77, %81 : vector<8x128xi1>, vector<8x128xf32>
    %c2_61 = arith.constant 2 : index
    %c0_62 = arith.constant 0 : index
    %c0_63 = arith.constant 0 : index
    %83 = vector.load %arg6[%c2_61, %c0_62, %c0_63] : memref<3x128x128xf32, #tpu.memory_space<vmem>>, vector<1x128x128xf32>
    %84 = vector.shape_cast %83 : vector<1x128x128xf32> to vector<128x128xf32>
    %c3_64 = arith.constant 3 : index
    %c0_65 = arith.constant 0 : index
    %c0_66 = arith.constant 0 : index
    %85 = vector.load %arg7[%c3_64, %c0_65, %c0_66] : memref<7x1x128xf32, #tpu.memory_space<vmem>>, vector<1x1x128xf32>
    %86 = vector.shape_cast %85 : vector<1x1x128xf32> to vector<1x128xf32>
    %cst_67 = arith.constant dense<0.000000e+00> : vector<8x128xf32>
    %87 = tpu.matmul %82, %84, %cst_67 {dimension_numbers = #tpu.dot_dimension_numbers<[1], [0], [0], [1], [0, 0, 1, 1], [], []>} : vector<8x128xf32>, vector<128x128xf32>, vector<8x128xf32> -> vector<8x128xf32>
    %88 = vector.broadcast %86 : vector<1x128xf32> to vector<8x128xf32>
    %89 = arith.addf %87, %88 : vector<8x128xf32>
    %cst_68 = arith.constant 0.000000e+00 : f32
    %90 = vector.broadcast %cst_68 : f32 to vector<8x128xf32>
    %91 = arith.maximumf %89, %90 : vector<8x128xf32>
    %c5 = arith.constant 5 : index
    %c0_69 = arith.constant 0 : index
    %c0_70 = arith.constant 0 : index
    %92 = vector.load %arg7[%c5, %c0_69, %c0_70] : memref<7x1x128xf32, #tpu.memory_space<vmem>>, vector<1x1x128xf32>
    %93 = vector.shape_cast %92 : vector<1x1x128xf32> to vector<1x128xf32>
    %94 = vector.broadcast %93 : vector<1x128xf32> to vector<8x128xf32>
    %95 = arith.mulf %91, %94 : vector<8x128xf32>
    %cst_71 = arith.constant dense<0.000000e+00> : vector<8xf32>
    %96 = vector.multi_reduction <add>, %95, %cst_71 [1] : vector<8x128xf32> to vector<8xf32>
    %97 = vector.shape_cast %96 : vector<8xf32> to vector<8x1xf32>
    %c6 = arith.constant 6 : index
    %c0_72 = arith.constant 0 : index
    %c0_73 = arith.constant 0 : index
    %98 = vector.load %arg7[%c6, %c0_72, %c0_73] : memref<7x1x128xf32, #tpu.memory_space<vmem>>, vector<1x1x128xf32>
    %99 = vector.shape_cast %98 : vector<1x1x128xf32> to vector<1x128xf32>
    %100 = vector.extract_strided_slice %99 {offsets = [0, 0], sizes = [1, 1], strides = [1, 1]} : vector<1x128xf32> to vector<1x1xf32>
    %101 = vector.broadcast %100 : vector<1x1xf32> to vector<8x1xf32>
    %102 = arith.addf %97, %101 : vector<8x1xf32>
    %c0_74 = arith.constant 0 : index
    %c0_75 = arith.constant 0 : index
    %103 = vector.load %arg8[%c0_74, %c0_75] : memref<8x1xf32, #tpu.memory_space<vmem>>, vector<8x1xf32>
    tpu.vector_store %arg8[%c0_74, %c0_75], %102 {strides = array<i32>} : memref<8x1xf32, #tpu.memory_space<vmem>>, vector<8x1xf32>,
    return
  }
  func.func @transform_0(%arg0: i32) -> (i32, i32) {
    %c0_i32 = arith.constant 0 : i32
    %c0_i32_0 = arith.constant 0 : i32
    return %arg0, %c0_i32 : i32, i32
  }
  func.func @transform_1(%arg0: i32) -> (i32, i32) {
    %c0_i32 = arith.constant 0 : i32
    %c0_i32_0 = arith.constant 0 : i32
    return %arg0, %c0_i32 : i32, i32
  }
  func.func @transform_2(%arg0: i32) -> (i32, i32, i32) {
    %c0_i32 = arith.constant 0 : i32
    %c0_i32_0 = arith.constant 0 : i32
    %c0_i32_1 = arith.constant 0 : i32
    %c0_i32_2 = arith.constant 0 : i32
    return %c0_i32, %c0_i32_0, %c0_i32_1 : i32, i32, i32
  }
  func.func @transform_3(%arg0: i32) -> (i32, i32, i32) {
    %c0_i32 = arith.constant 0 : i32
    %c0_i32_0 = arith.constant 0 : i32
    %c0_i32_1 = arith.constant 0 : i32
    %c0_i32_2 = arith.constant 0 : i32
    return %c0_i32, %c0_i32_0, %c0_i32_1 : i32, i32, i32
  }
  func.func @transform_4(%arg0: i32) -> (i32, i32) {
    %c0_i32 = arith.constant 0 : i32
    %c0_i32_0 = arith.constant 0 : i32
    %c0_i32_1 = arith.constant 0 : i32
    return %c0_i32, %c0_i32_0 : i32, i32
  }
  func.func @transform_5(%arg0: i32) -> (i32, i32, i32) {
    %c0_i32 = arith.constant 0 : i32
    %c0_i32_0 = arith.constant 0 : i32
    %c0_i32_1 = arith.constant 0 : i32
    %c0_i32_2 = arith.constant 0 : i32
    return %c0_i32, %c0_i32_0, %c0_i32_1 : i32, i32, i32
  }
  func.func @transform_6(%arg0: i32) -> (i32, i32, i32) {
    %c0_i32 = arith.constant 0 : i32
    %c0_i32_0 = arith.constant 0 : i32
    %c0_i32_1 = arith.constant 0 : i32
    %c0_i32_2 = arith.constant 0 : i32
    return %c0_i32, %c0_i32_0, %c0_i32_1 : i32, i32, i32
  }
  func.func @transform_7(%arg0: i32) -> (i32, i32) {
    %c0_i32 = arith.constant 0 : i32
    %c0_i32_0 = arith.constant 0 : i32
    return %arg0, %c0_i32 : i32, i32
  }
  func.func @transform_8(%arg0: i32) -> (i32, i32) {
    %c0_i32 = arith.constant 0 : i32
    %c0_i32_0 = arith.constant 0 : i32
    return %arg0, %c0_i32 : i32, i32
  }
}

</mosaic_0001>

<llo_original>
// kernel: tpu_custom_call.1
$region0: #{tpu_custom_call.1}
  #allocation0 [shape = 'u32[]', space=smem, size = 0x4, offset = 0x4, fixed_abs, tag = 'smem constant byte address 0x4 - core index']
  #allocation1 [shape = 'u32[144,128]{1,0:T(1,128)}', space=vmem, size = 0x12000, scoped, tag = 'internal scratch']
  %s0 = inlined_call_operand.vmem [shape: f32[8,32], index: 0, kind: input, shape index: {}]
  %s1 = inlined_call_operand.vmem [shape: f32[8,1], index: 1, kind: input, shape index: {}]
  %s2 = inlined_call_operand.hbm [shape: f32[4,32,32], index: 2, kind: input, shape index: {}]
  %s3 = inlined_call_operand.vmem [shape: f32[4,1,32], index: 3, kind: input, shape index: {}]
  %s4 = inlined_call_operand.hbm [shape: f32[32,128], index: 4, kind: input, shape index: {}]
  %s5 = inlined_call_operand.hbm [shape: f32[3,128,128], index: 5, kind: input, shape index: {}]
  %s6 = inlined_call_operand.vmem [shape: f32[7,1,128], index: 6, kind: input, shape index: {}]
  %s7 = inlined_call_operand.vmem [shape: f32[8,1], index: 7, kind: output, shape index: {0}]
  %s8 = inlined_call_operand.hbm [shape: f32[8,17], index: 8, kind: output, shape index: {1}]
  %9 = xla_tuple %s7, %s8
  %s10 = sld [smem:[#allocation0]]
  $region58: #{tpu_custom_call.1} parent=0
    _
  %s12 = ssub.s32 1, %s10
  %s13 = scalar_select 0, %s12, %s10
  $region1: #{tpu_custom_call.1} parent=0
    #allocation2 [shape = 'u8[65536]{0}', space=vmem, size = 0x10000, scoped, tag = 'input window, operand 2, single buffered']
    #allocation3 [shape = 's32[1]{0}', space=sflag, size = 0x4, scoped, tag = 'scoped memory for tpu_custom_call.1']
    #allocation4 [shape = 's32[1]{0}', space=sflag, size = 0x4, scoped, tag = 'scoped memory for tpu_custom_call.1']
    #allocation5 [shape = 'u8[16384]{0}', space=vmem, size = 0x4000, scoped, tag = 'input window, operand 4, single buffered']
    #allocation6 [shape = 's32[1]{0}', space=sflag, size = 0x4, scoped, tag = 'scoped memory for tpu_custom_call.1']
    #allocation7 [shape = 'u8[196608]{0}', space=vmem, size = 0x30000, scoped, tag = 'input window, operand 5, single buffered']
    #allocation8 [shape = 'u8[4096]{0}', space=vmem, size = 0x1000, scoped, tag = 'output window, operand 1, single buffered']
    %14 = vsyncpa [#allocation3], 0
    %15 = vsyncpa [#allocation6], 0
    %16 = vsyncpa [#allocation4], 0
    // Predicated region
    $region2: #{tpu_custom_call.1} parent=1 // pred_check
      _
    $region3: #{tpu_custom_call.1} parent=1 // pred_check_branch
      %18 = sbr.rel (0) target = $region5
    $region4: #{tpu_custom_call.1} parent=1 // pred_region
      _
    $region5: #{tpu_custom_call.1} parent=1 // pred_fallthru
      _
    // Predicated region
    $region6: #{tpu_custom_call.1} parent=1 // pred_check
      _
    $region7: #{tpu_custom_call.1} parent=1 // pred_check_branch
      %20 = sbr.rel (0) target = $region9
    $region8: #{tpu_custom_call.1} parent=1 // pred_region
      _
    $region9: #{tpu_custom_call.1} parent=1 // pred_fallthru
      _
    // Predicated region
    $region10: #{tpu_custom_call.1} parent=1 // pred_check
      _
    $region11: #{tpu_custom_call.1} parent=1 // pred_check_branch
      %22 = sbr.rel (0) target = $region13
    $region12: #{tpu_custom_call.1} parent=1 // pred_region
      %s24 = ssub.s32 2048, 2048
      %25 = vsyncadd [#allocation3], %s24
      %s26 = sshll.u32 [#allocation2], 4
      %s27 = int_to_ptr.vmem [resolvable:$true] %s26
      %32 = dma.hbm_to_vmem [thread:$0]  %s2, 2048, %s27, [#allocation3], 128, 128, 8
    $region13: #{tpu_custom_call.1} parent=1 // pred_fallthru
      _
    // Predicated region
    $region14: #{tpu_custom_call.1} parent=1 // pred_check
      _
    $region15: #{tpu_custom_call.1} parent=1 // pred_check_branch
      %34 = sbr.rel (0) target = $region17
    $region16: #{tpu_custom_call.1} parent=1 // pred_region
      _
    $region17: #{tpu_custom_call.1} parent=1 // pred_fallthru
      _
    // Predicated region
    $region18: #{tpu_custom_call.1} parent=1 // pred_check
      _
    $region19: #{tpu_custom_call.1} parent=1 // pred_check_branch
      %36 = sbr.rel (0) target = $region21
    $region20: #{tpu_custom_call.1} parent=1 // pred_region
      %s38 = ssub.s32 512, 512
      %39 = vsyncadd [#allocation6], %s38
      %s40 = sshll.u32 [#allocation5], 4
      %s41 = int_to_ptr.vmem [resolvable:$true] %s40
      %46 = dma.hbm_to_vmem [thread:$0]  %s4, 512, %s41, [#allocation6], 128, 128, 8
    $region21: #{tpu_custom_call.1} parent=1 // pred_fallthru
      _
    // Predicated region
    $region22: #{tpu_custom_call.1} parent=1 // pred_check
      _
    $region23: #{tpu_custom_call.1} parent=1 // pred_check_branch
      %48 = sbr.rel (0) target = $region25
    $region24: #{tpu_custom_call.1} parent=1 // pred_region
      %s50 = ssub.s32 6144, 6144
      %51 = vsyncadd [#allocation6], %s50
      %s52 = sshll.u32 [#allocation7], 4
      %s53 = int_to_ptr.vmem [resolvable:$true] %s52
      %58 = dma.hbm_to_vmem [thread:$0]  %s5, 6144, %s53, [#allocation6], 128, 128, 8
    $region25: #{tpu_custom_call.1} parent=1 // pred_fallthru
      _
    // Predicated region
    $region26: #{tpu_custom_call.1} parent=1 // pred_check
      _
    $region27: #{tpu_custom_call.1} parent=1 // pred_check_branch
      %60 = sbr.rel (0) target = $region29
    $region28: #{tpu_custom_call.1} parent=1 // pred_region
      _
    $region29: #{tpu_custom_call.1} parent=1 // pred_fallthru
      _
    // Predicated region
    $region30: #{tpu_custom_call.1} parent=1 // pred_check
      _
    $region31: #{tpu_custom_call.1} parent=1 // pred_check_branch
      %62 = sbr.rel (0) target = $region33
    $region32: #{tpu_custom_call.1} parent=1 // pred_region
      %63 = dma.done [#allocation3], 2048
    $region33: #{tpu_custom_call.1} parent=1 // pred_fallthru
      _
    // Predicated region
    $region34: #{tpu_custom_call.1} parent=1 // pred_check
      _
    $region35: #{tpu_custom_call.1} parent=1 // pred_check_branch
      %65 = sbr.rel (0) target = $region37
    $region36: #{tpu_custom_call.1} parent=1 // pred_region
      %66 = dma.done [#allocation6], 512
    $region37: #{tpu_custom_call.1} parent=1 // pred_fallthru
      _
    // Predicated region
    $region38: #{tpu_custom_call.1} parent=1 // pred_check
      _
    $region39: #{tpu_custom_call.1} parent=1 // pred_check_branch
      %68 = sbr.rel (0) target = $region41
    $region40: #{tpu_custom_call.1} parent=1 // pred_region
      %69 = dma.done [#allocation6], 6144
    $region41: #{tpu_custom_call.1} parent=1 // pred_fallthru
      _
    %v70 = vld [vmem:[%s0] sm:$0xff]
    %v71 = vld [vmem:[%s1] sm:$0xff]
    %v72 = vld [vmem:[#allocation2] sm:$0xff]
    %v73 = vld [vmem:[#allocation2 + $0x8] sm:$0xff]
    %v74 = vld [vmem:[#allocation2 + $0x10] sm:$0xff]
    %v75 = vld [vmem:[#allocation2 + $0x18] sm:$0xff]
    %v76 = vld [vmem:[%s3] sm:$0x1]
    %v78 = vlaneseq
    %v79 = vshrl.u32 %v78, 7
    %v80 = vsub.s32 0, %v79
    %v81 = vrot.slane %v76, %v80
    %vm83 = vcmask 261120
    %v85 = vsel %vm83, %v70, 0
    %87 = vmatprep.subr.mxu0 0.0
    %88 = vmatpush1.msra.mxu0 %v72
    %89 = vmatprep.subr.mxu0 0.0
    %90 = vmatpush1.msra.mxu0 %v73
    %91 = vmatprep.subr.mxu0 0.0
    %92 = vmatpush1.msra.mxu0 %v74
    %93 = vmatprep.subr.mxu0 0.0
    %94 = vmatpush1.msra.mxu0 %v75
    %95 = vmatprep.subr.mxu0 0.0
    %96 = vmatpush1.msra.mxu0 0.0
    %97 = vmatprep.subr.mxu0 0.0
    %98 = vmatpush1.msra.mxu0 0.0
    %99 = vmatprep.subr.mxu0 0.0
    %100 = vmatpush1.msra.mxu0 0.0
    %101 = vmatprep.subr.mxu0 0.0
    %102 = vmatpush1.msra.mxu0 0.0
    %103 = vmatprep.subr.mxu0 0.0
    %104 = vmatpush1.msra.mxu0 0.0
    %105 = vmatprep.subr.mxu0 0.0
    %106 = vmatpush1.msra.mxu0 0.0
    %107 = vmatprep.subr.mxu0 0.0
    %108 = vmatpush1.msra.mxu0 0.0
    %109 = vmatprep.subr.mxu0 0.0
    %110 = vmatpush1.msra.mxu0 0.0
    %111 = vmatprep.subr.mxu0 0.0
    %112 = vmatpush1.msra.mxu0 0.0
    %113 = vmatprep.subr.mxu0 0.0
    %114 = vmatpush1.msra.mxu0 0.0
    %115 = vmatprep.subr.mxu0 0.0
    %116 = vmatpush1.msra.mxu0 0.0
    %117 = vmatprep.subr.mxu0 0.0
    %118 = vmatpush1.msra.mxu0 0.0
    %119 = vmatprep.subr.mxu0 0.0
    %120 = vmatpush1.msra.mxu0 0.0
    %121 = vmatprep.subr.mxu0 0.0
    %122 = vmatpush1.msra.mxu0 0.0
    %123 = vmatprep.subr.mxu0 0.0
    %124 = vmatpush1.msra.mxu0 0.0
    %125 = vmatprep.subr.mxu0 0.0
    %126 = vmatpush1.msra.mxu0 0.0
    %127 = vmatprep.subr.mxu0 0.0
    %128 = vmatpush1.msra.mxu0 0.0
    %129 = vmatprep.subr.mxu0 0.0
    %130 = vmatpush1.msra.mxu0 0.0
    %131 = vmatprep.subr.mxu0 0.0
    %132 = vmatpush1.msra.mxu0 0.0
    %133 = vmatprep.subr.mxu0 0.0
    %134 = vmatpush1.msra.mxu0 0.0
    %135 = vmatprep.subr.mxu0 0.0
    %136 = vmatpush1.msra.mxu0 0.0
    %137 = vmatprep.subr.mxu0 0.0
    %138 = vmatpush1.msra.mxu0 0.0
    %139 = vmatprep.subr.mxu0 0.0
    %140 = vmatpush1.msra.mxu0 0.0
    %141 = vmatprep.subr.mxu0 0.0
    %142 = vmatpush1.msra.mxu0 0.0
    %143 = vmatprep.subr.mxu0 0.0
    %144 = vmatpush1.msra.mxu0 0.0
    %145 = vmatprep.subr.mxu0 0.0
    %146 = vmatpush1.msra.mxu0 0.0
    %147 = vmatprep.subr.mxu0 0.0
    %148 = vmatpush1.msra.mxu0 0.0
    %149 = vmatprep.subr.mxu0 0.0
    %150 = vmatpush1.msra.mxu0 0.0
    %151 = vmatprep.mubr.f32.mxu0 0.0
    %152 = vmatmul.mubr.f32.gmra.mrb[0].mxu0 %v85
    %v153 = vpop.f32.mrb[0].mxu0
    %v154 = vadd.f32 %v81, %v153
    %v155 = vpop.f32.mrb[0].mxu0
    %156 = vdwg.mxu0
    %vm157 = vcmp.gt.f32.partialorder %v154, 0.0
    %v158 = vmul.f32 %v154, 0.01
    %v159 = vsel %vm157, %v154, %v158
    %s160 = scalar_lea.vmem [#allocation2], 32
    %v161 = vld [vmem:[%s160] sm:$0xff]
    %v162 = vld [vmem:[%s160 + $0x8] sm:$0xff]
    %v163 = vld [vmem:[%s160 + $0x10] sm:$0xff]
    %v164 = vld [vmem:[%s160 + $0x18] sm:$0xff]
    %s165 = scalar_lea.vmem %s3, 1
    %v166 = vld [vmem:[%s165] sm:$0x1]
    %v168 = vlaneseq
    %v169 = vshrl.u32 %v168, 7
    %v170 = vsub.s32 0, %v169
    %v171 = vrot.slane %v166, %v170
    %v174 = vsel %vm83, %v159, 0
    %176 = vmatprep.subr.mxu0 0.0
    %177 = vmatpush1.msra.mxu0 %v161
    %178 = vmatprep.subr.mxu0 0.0
    %179 = vmatpush1.msra.mxu0 %v162
    %180 = vmatprep.subr.mxu0 0.0
    %181 = vmatpush1.msra.mxu0 %v163
    %182 = vmatprep.subr.mxu0 0.0
    %183 = vmatpush1.msra.mxu0 %v164
    %184 = vmatprep.subr.mxu0 0.0
    %185 = vmatpush1.msra.mxu0 0.0
    %186 = vmatprep.subr.mxu0 0.0
    %187 = vmatpush1.msra.mxu0 0.0
    %188 = vmatprep.subr.mxu0 0.0
    %189 = vmatpush1.msra.mxu0 0.0
    %190 = vmatprep.subr.mxu0 0.0
    %191 = vmatpush1.msra.mxu0 0.0
    %192 = vmatprep.subr.mxu0 0.0
    %193 = vmatpush1.msra.mxu0 0.0
    %194 = vmatprep.subr.mxu0 0.0
    %195 = vmatpush1.msra.mxu0 0.0
    %196 = vmatprep.subr.mxu0 0.0
    %197 = vmatpush1.msra.mxu0 0.0
    %198 = vmatprep.subr.mxu0 0.0
    %199 = vmatpush1.msra.mxu0 0.0
    %200 = vmatprep.subr.mxu0 0.0
    %201 = vmatpush1.msra.mxu0 0.0
    %202 = vmatprep.subr.mxu0 0.0
    %203 = vmatpush1.msra.mxu0 0.0
    %204 = vmatprep.subr.mxu0 0.0
    %205 = vmatpush1.msra.mxu0 0.0
    %206 = vmatprep.subr.mxu0 0.0
    %207 = vmatpush1.msra.mxu0 0.0
    %208 = vmatprep.subr.mxu0 0.0
    %209 = vmatpush1.msra.mxu0 0.0
    %210 = vmatprep.subr.mxu0 0.0
    %211 = vmatpush1.msra.mxu0 0.0
    %212 = vmatprep.subr.mxu0 0.0
    %213 = vmatpush1.msra.mxu0 0.0
    %214 = vmatprep.subr.mxu0 0.0
    %215 = vmatpush1.msra.mxu0 0.0
    %216 = vmatprep.subr.mxu0 0.0
    %217 = vmatpush1.msra.mxu0 0.0
    %218 = vmatprep.subr.mxu0 0.0
    %219 = vmatpush1.msra.mxu0 0.0
    %220 = vmatprep.subr.mxu0 0.0
    %221 = vmatpush1.msra.mxu0 0.0
    %222 = vmatprep.subr.mxu0 0.0
    %223 = vmatpush1.msra.mxu0 0.0
    %224 = vmatprep.subr.mxu0 0.0
    %225 = vmatpush1.msra.mxu0 0.0
    %226 = vmatprep.subr.mxu0 0.0
    %227 = vmatpush1.msra.mxu0 0.0
    %228 = vmatprep.subr.mxu0 0.0
    %229 = vmatpush1.msra.mxu0 0.0
    %230 = vmatprep.subr.mxu0 0.0
    %231 = vmatpush1.msra.mxu0 0.0
    %232 = vmatprep.subr.mxu0 0.0
    %233 = vmatpush1.msra.mxu0 0.0
    %234 = vmatprep.subr.mxu0 0.0
    %235 = vmatpush1.msra.mxu0 0.0
    %236 = vmatprep.subr.mxu0 0.0
    %237 = vmatpush1.msra.mxu0 0.0
    %238 = vmatprep.subr.mxu0 0.0
    %239 = vmatpush1.msra.mxu0 0.0
    %240 = vmatprep.mubr.f32.mxu0 0.0
    %241 = vmatmul.mubr.f32.gmra.mrb[0].mxu0 %v174
    %v242 = vpop.f32.mrb[0].mxu0
    %v243 = vadd.f32 %v171, %v242
    %v244 = vpop.f32.mrb[0].mxu0
    %245 = vdwg.mxu0
    %v246 = vmax.f32 %v243, 0.0
    %s247 = scalar_lea.vmem [#allocation2], 64
    %v248 = vld [vmem:[%s247] sm:$0xff]
    %v249 = vld [vmem:[%s247 + $0x8] sm:$0xff]
    %v250 = vld [vmem:[%s247 + $0x10] sm:$0xff]
    %v251 = vld [vmem:[%s247 + $0x18] sm:$0xff]
    %s252 = scalar_lea.vmem %s3, 2
    %v253 = vld [vmem:[%s252] sm:$0x1]
    %v255 = vlaneseq
    %v256 = vshrl.u32 %v255, 7
    %v257 = vsub.s32 0, %v256
    %v258 = vrot.slane %v253, %v257
    %v261 = vsel %vm83, %v246, 0
    %263 = vmatprep.subr.mxu0 0.0
    %264 = vmatpush1.msra.mxu0 %v248
    %265 = vmatprep.subr.mxu0 0.0
    %266 = vmatpush1.msra.mxu0 %v249
    %267 = vmatprep.subr.mxu0 0.0
    %268 = vmatpush1.msra.mxu0 %v250
    %269 = vmatprep.subr.mxu0 0.0
    %270 = vmatpush1.msra.mxu0 %v251
    %271 = vmatprep.subr.mxu0 0.0
    %272 = vmatpush1.msra.mxu0 0.0
    %273 = vmatprep.subr.mxu0 0.0
    %274 = vmatpush1.msra.mxu0 0.0
    %275 = vmatprep.subr.mxu0 0.0
    %276 = vmatpush1.msra.mxu0 0.0
    %277 = vmatprep.subr.mxu0 0.0
    %278 = vmatpush1.msra.mxu0 0.0
    %279 = vmatprep.subr.mxu0 0.0
    %280 = vmatpush1.msra.mxu0 0.0
    %281 = vmatprep.subr.mxu0 0.0
    %282 = vmatpush1.msra.mxu0 0.0
    %283 = vmatprep.subr.mxu0 0.0
    %284 = vmatpush1.msra.mxu0 0.0
    %285 = vmatprep.subr.mxu0 0.0
    %286 = vmatpush1.msra.mxu0 0.0
    %287 = vmatprep.subr.mxu0 0.0
    %288 = vmatpush1.msra.mxu0 0.0
    %289 = vmatprep.subr.mxu0 0.0
    %290 = vmatpush1.msra.mxu0 0.0
    %291 = vmatprep.subr.mxu0 0.0
    %292 = vmatpush1.msra.mxu0 0.0
    %293 = vmatprep.subr.mxu0 0.0
    %294 = vmatpush1.msra.mxu0 0.0
    %295 = vmatprep.subr.mxu0 0.0
    %296 = vmatpush1.msra.mxu0 0.0
    %297 = vmatprep.subr.mxu0 0.0
    %298 = vmatpush1.msra.mxu0 0.0
    %299 = vmatprep.subr.mxu0 0.0
    %300 = vmatpush1.msra.mxu0 0.0
    %301 = vmatprep.subr.mxu0 0.0
    %302 = vmatpush1.msra.mxu0 0.0
    %303 = vmatprep.subr.mxu0 0.0
    %304 = vmatpush1.msra.mxu0 0.0
    %305 = vmatprep.subr.mxu0 0.0
    %306 = vmatpush1.msra.mxu0 0.0
    %307 = vmatprep.subr.mxu0 0.0
    %308 = vmatpush1.msra.mxu0 0.0
    %309 = vmatprep.subr.mxu0 0.0
    %310 = vmatpush1.msra.mxu0 0.0
    %311 = vmatprep.subr.mxu0 0.0
    %312 = vmatpush1.msra.mxu0 0.0
    %313 = vmatprep.subr.mxu0 0.0
    %314 = vmatpush1.msra.mxu0 0.0
    %315 = vmatprep.subr.mxu0 0.0
    %316 = vmatpush1.msra.mxu0 0.0
    %317 = vmatprep.subr.mxu0 0.0
    %318 = vmatpush1.msra.mxu0 0.0
    %319 = vmatprep.subr.mxu0 0.0
    %320 = vmatpush1.msra.mxu0 0.0
    %321 = vmatprep.subr.mxu0 0.0
    %322 = vmatpush1.msra.mxu0 0.0
    %323 = vmatprep.subr.mxu0 0.0
    %324 = vmatpush1.msra.mxu0 0.0
    %325 = vmatprep.subr.mxu0 0.0
    %326 = vmatpush1.msra.mxu0 0.0
    %327 = vmatprep.mubr.f32.mxu0 0.0
    %328 = vmatmul.mubr.f32.gmra.mrb[0].mxu0 %v261
    %v329 = vpop.f32.mrb[0].mxu0
    %v330 = vadd.f32 %v258, %v329
    %v331 = vpop.f32.mrb[0].mxu0
    %332 = vdwg.mxu0
    %vm333 = vcmp.gt.f32.partialorder %v330, 0.0
    %v334 = vmul.f32 %v330, 0.01
    %v335 = vsel %vm333, %v330, %v334
    %s336 = scalar_lea.vmem [#allocation2], 96
    %v337 = vld [vmem:[%s336] sm:$0xff]
    %v338 = vld [vmem:[%s336 + $0x8] sm:$0xff]
    %v339 = vld [vmem:[%s336 + $0x10] sm:$0xff]
    %v340 = vld [vmem:[%s336 + $0x18] sm:$0xff]
    %s341 = scalar_lea.vmem %s3, 3
    %v342 = vld [vmem:[%s341] sm:$0x1]
    %v344 = vlaneseq
    %v345 = vshrl.u32 %v344, 7
    %v346 = vsub.s32 0, %v345
    %v347 = vrot.slane %v342, %v346
    %v350 = vsel %vm83, %v335, 0
    %352 = vmatprep.subr.mxu0 0.0
    %353 = vmatpush1.msra.mxu0 %v337
    %354 = vmatprep.subr.mxu0 0.0
    %355 = vmatpush1.msra.mxu0 %v338
    %356 = vmatprep.subr.mxu0 0.0
    %357 = vmatpush1.msra.mxu0 %v339
    %358 = vmatprep.subr.mxu0 0.0
    %359 = vmatpush1.msra.mxu0 %v340
    %360 = vmatprep.subr.mxu0 0.0
    %361 = vmatpush1.msra.mxu0 0.0
    %362 = vmatprep.subr.mxu0 0.0
    %363 = vmatpush1.msra.mxu0 0.0
    %364 = vmatprep.subr.mxu0 0.0
    %365 = vmatpush1.msra.mxu0 0.0
    %366 = vmatprep.subr.mxu0 0.0
    %367 = vmatpush1.msra.mxu0 0.0
    %368 = vmatprep.subr.mxu0 0.0
    %369 = vmatpush1.msra.mxu0 0.0
    %370 = vmatprep.subr.mxu0 0.0
    %371 = vmatpush1.msra.mxu0 0.0
    %372 = vmatprep.subr.mxu0 0.0
    %373 = vmatpush1.msra.mxu0 0.0
    %374 = vmatprep.subr.mxu0 0.0
    %375 = vmatpush1.msra.mxu0 0.0
    %376 = vmatprep.subr.mxu0 0.0
    %377 = vmatpush1.msra.mxu0 0.0
    %378 = vmatprep.subr.mxu0 0.0
    %379 = vmatpush1.msra.mxu0 0.0
    %380 = vmatprep.subr.mxu0 0.0
    %381 = vmatpush1.msra.mxu0 0.0
    %382 = vmatprep.subr.mxu0 0.0
    %383 = vmatpush1.msra.mxu0 0.0
    %384 = vmatprep.subr.mxu0 0.0
    %385 = vmatpush1.msra.mxu0 0.0
    %386 = vmatprep.subr.mxu0 0.0
    %387 = vmatpush1.msra.mxu0 0.0
    %388 = vmatprep.subr.mxu0 0.0
    %389 = vmatpush1.msra.mxu0 0.0
    %390 = vmatprep.subr.mxu0 0.0
    %391 = vmatpush1.msra.mxu0 0.0
    %392 = vmatprep.subr.mxu0 0.0
    %393 = vmatpush1.msra.mxu0 0.0
    %394 = vmatprep.subr.mxu0 0.0
    %395 = vmatpush1.msra.mxu0 0.0
    %396 = vmatprep.subr.mxu0 0.0
    %397 = vmatpush1.msra.mxu0 0.0
    %398 = vmatprep.subr.mxu0 0.0
    %399 = vmatpush1.msra.mxu0 0.0
    %400 = vmatprep.subr.mxu0 0.0
    %401 = vmatpush1.msra.mxu0 0.0
    %402 = vmatprep.subr.mxu0 0.0
    %403 = vmatpush1.msra.mxu0 0.0
    %404 = vmatprep.subr.mxu0 0.0
    %405 = vmatpush1.msra.mxu0 0.0
    %406 = vmatprep.subr.mxu0 0.0
    %407 = vmatpush1.msra.mxu0 0.0
    %408 = vmatprep.subr.mxu0 0.0
    %409 = vmatpush1.msra.mxu0 0.0
    %410 = vmatprep.subr.mxu0 0.0
    %411 = vmatpush1.msra.mxu0 0.0
    %412 = vmatprep.subr.mxu0 0.0
    %413 = vmatpush1.msra.mxu0 0.0
    %414 = vmatprep.subr.mxu0 0.0
    %415 = vmatpush1.msra.mxu0 0.0
    %416 = vmatprep.mubr.f32.mxu0 0.0
    %417 = vmatmul.mubr.f32.gmra.mrb[0].mxu0 %v350
    %v418 = vpop.f32.mrb[0].mxu0
    %v419 = vadd.f32 %v347, %v418
    %v420 = vpop.f32.mrb[0].mxu0
    %421 = vdwg.mxu0
    %423 = vrot.lane.b32.xlu0 %v71, 16
    %v424 = vpop.permute.xlu0 %423
    %vm426 = vcmask 130048
    %v427 = vsel %vm426, %v419, %v424
    %vm428 = vcmask 138240
    %429 = vst.msk [vmem:[#allocation8] sm:$0xff] %vm428, %v427
    %v430 = vld [vmem:[#allocation5] sm:$0xff]
    %v431 = vld [vmem:[#allocation5 + $0x8] sm:$0xff]
    %v432 = vld [vmem:[#allocation5 + $0x10] sm:$0xff]
    %v433 = vld [vmem:[#allocation5 + $0x18] sm:$0xff]
    %s434 = scalar_lea.vmem %s6, 4
    %v435 = vld [vmem:[%s434] sm:$0x1]
    %436 = vset.pattern.permute.xlu0 0
    %437 = vperm.xlu0 %436, %v71
    %v438 = vpop.permute.xlu0 %437
    %v441 = vlaneseq
    %v442 = vshrl.u32 %v441, 7
    %v443 = vsub.s32 0, %v442
    %v444 = vrot.slane %v435, %v443
    %v446 = vmul.f32 %v438, %v444
    %v448 = vsel %vm83, %v419, 0
    %450 = vmatprep.subr.mxu0 0.0
    %451 = vmatpush1.msra.mxu0 %v430
    %452 = vmatprep.subr.mxu0 0.0
    %453 = vmatpush1.msra.mxu0 %v431
    %454 = vmatprep.subr.mxu0 0.0
    %455 = vmatpush1.msra.mxu0 %v432
    %456 = vmatprep.subr.mxu0 0.0
    %457 = vmatpush1.msra.mxu0 %v433
    %458 = vmatprep.subr.mxu0 0.0
    %459 = vmatpush1.msra.mxu0 0.0
    %460 = vmatprep.subr.mxu0 0.0
    %461 = vmatpush1.msra.mxu0 0.0
    %462 = vmatprep.subr.mxu0 0.0
    %463 = vmatpush1.msra.mxu0 0.0
    %464 = vmatprep.subr.mxu0 0.0
    %465 = vmatpush1.msra.mxu0 0.0
    %466 = vmatprep.subr.mxu0 0.0
    %467 = vmatpush1.msra.mxu0 0.0
    %468 = vmatprep.subr.mxu0 0.0
    %469 = vmatpush1.msra.mxu0 0.0
    %470 = vmatprep.subr.mxu0 0.0
    %471 = vmatpush1.msra.mxu0 0.0
    %472 = vmatprep.subr.mxu0 0.0
    %473 = vmatpush1.msra.mxu0 0.0
    %474 = vmatprep.subr.mxu0 0.0
    %475 = vmatpush1.msra.mxu0 0.0
    %476 = vmatprep.subr.mxu0 0.0
    %477 = vmatpush1.msra.mxu0 0.0
    %478 = vmatprep.subr.mxu0 0.0
    %479 = vmatpush1.msra.mxu0 0.0
    %480 = vmatprep.subr.mxu0 0.0
    %481 = vmatpush1.msra.mxu0 0.0
    %482 = vmatprep.subr.mxu0 0.0
    %483 = vmatpush1.msra.mxu0 0.0
    %484 = vmatprep.subr.mxu0 0.0
    %485 = vmatpush1.msra.mxu0 0.0
    %486 = vmatprep.subr.mxu0 0.0
    %487 = vmatpush1.msra.mxu0 0.0
    %488 = vmatprep.subr.mxu0 0.0
    %489 = vmatpush1.msra.mxu0 0.0
    %490 = vmatprep.subr.mxu0 0.0
    %491 = vmatpush1.msra.mxu0 0.0
    %492 = vmatprep.subr.mxu0 0.0
    %493 = vmatpush1.msra.mxu0 0.0
    %494 = vmatprep.subr.mxu0 0.0
    %495 = vmatpush1.msra.mxu0 0.0
    %496 = vmatprep.subr.mxu0 0.0
    %497 = vmatpush1.msra.mxu0 0.0
    %498 = vmatprep.subr.mxu0 0.0
    %499 = vmatpush1.msra.mxu0 0.0
    %500 = vmatprep.subr.mxu0 0.0
    %501 = vmatpush1.msra.mxu0 0.0
    %502 = vmatprep.subr.mxu0 0.0
    %503 = vmatpush1.msra.mxu0 0.0
    %504 = vmatprep.subr.mxu0 0.0
    %505 = vmatpush1.msra.mxu0 0.0
    %506 = vmatprep.subr.mxu0 0.0
    %507 = vmatpush1.msra.mxu0 0.0
    %508 = vmatprep.subr.mxu0 0.0
    %509 = vmatpush1.msra.mxu0 0.0
    %510 = vmatprep.subr.mxu0 0.0
    %511 = vmatpush1.msra.mxu0 0.0
    %512 = vmatprep.subr.mxu0 0.0
    %513 = vmatpush1.msra.mxu0 0.0
    %514 = vmatprep.mubr.f32.mxu0 0.0
    %515 = vmatmul.mubr.f32.gmra.mrb[0].mxu0 %v448
    %v516 = vpop.f32.mrb[0].mxu0
    %v517 = vadd.f32 %v446, %v516
    %v518 = vpop.f32.mrb[0].mxu0
    %519 = vdwg.mxu0
    %v520 = vld [vmem:[%s6] sm:$0x1]
    %v522 = vlaneseq
    %v523 = vshrl.u32 %v522, 7
    %v524 = vsub.s32 0, %v523
    %v525 = vrot.slane %v520, %v524
    %v527 = vadd.f32 %v517, %v525
    %vm528 = vcmp.gt.f32.partialorder %v527, 0.0
    %v529 = vmul.f32 %v527, 0.01
    %v530 = vsel %vm528, %v527, %v529
    %v531 = vld [vmem:[#allocation7] sm:$0xff]
    %v532 = vld [vmem:[#allocation7 + $0x8] sm:$0xff]
    %v533 = vld [vmem:[#allocation7 + $0x10] sm:$0xff]
    %v534 = vld [vmem:[#allocation7 + $0x18] sm:$0xff]
    %v535 = vld [vmem:[#allocation7 + $0x20] sm:$0xff]
    %v536 = vld [vmem:[#allocation7 + $0x28] sm:$0xff]
    %v537 = vld [vmem:[#allocation7 + $0x30] sm:$0xff]
    %v538 = vld [vmem:[#allocation7 + $0x38] sm:$0xff]
    %v539 = vld [vmem:[#allocation7 + $0x40] sm:$0xff]
    %v540 = vld [vmem:[#allocation7 + $0x48] sm:$0xff]
    %v541 = vld [vmem:[#allocation7 + $0x50] sm:$0xff]
    %v542 = vld [vmem:[#allocation7 + $0x58] sm:$0xff]
    %v543 = vld [vmem:[#allocation7 + $0x60] sm:$0xff]
    %v544 = vld [vmem:[#allocation7 + $0x68] sm:$0xff]
    %v545 = vld [vmem:[#allocation7 + $0x70] sm:$0xff]
    %v546 = vld [vmem:[#allocation7 + $0x78] sm:$0xff]
    %s547 = scalar_lea.vmem %s6, 1
    %v548 = vld [vmem:[%s547] sm:$0x1]
    %v550 = vlaneseq
    %v551 = vshrl.u32 %v550, 7
    %v552 = vsub.s32 0, %v551
    %v553 = vrot.slane %v548, %v552
    %555 = vmatprep.subr.mxu0 0.0
    %556 = vmatpush1.msra.mxu0 %v531
    %557 = vmatprep.subr.mxu0 0.0
    %558 = vmatpush1.msra.mxu0 %v532
    %559 = vmatprep.subr.mxu0 0.0
    %560 = vmatpush1.msra.mxu0 %v533
    %561 = vmatprep.subr.mxu0 0.0
    %562 = vmatpush1.msra.mxu0 %v534
    %563 = vmatprep.subr.mxu0 0.0
    %564 = vmatpush1.msra.mxu0 %v535
    %565 = vmatprep.subr.mxu0 0.0
    %566 = vmatpush1.msra.mxu0 %v536
    %567 = vmatprep.subr.mxu0 0.0
    %568 = vmatpush1.msra.mxu0 %v537
    %569 = vmatprep.subr.mxu0 0.0
    %570 = vmatpush1.msra.mxu0 %v538
    %571 = vmatprep.subr.mxu0 0.0
    %572 = vmatpush1.msra.mxu0 %v539
    %573 = vmatprep.subr.mxu0 0.0
    %574 = vmatpush1.msra.mxu0 %v540
    %575 = vmatprep.subr.mxu0 0.0
    %576 = vmatpush1.msra.mxu0 %v541
    %577 = vmatprep.subr.mxu0 0.0
    %578 = vmatpush1.msra.mxu0 %v542
    %579 = vmatprep.subr.mxu0 0.0
    %580 = vmatpush1.msra.mxu0 %v543
    %581 = vmatprep.subr.mxu0 0.0
    %582 = vmatpush1.msra.mxu0 %v544
    %583 = vmatprep.subr.mxu0 0.0
    %584 = vmatpush1.msra.mxu0 %v545
    %585 = vmatprep.subr.mxu0 0.0
    %586 = vmatpush1.msra.mxu0 %v546
    %587 = vmatprep.subr.mxu0 0.0
    %588 = vmatpush1.msra.mxu0 0.0
    %589 = vmatprep.subr.mxu0 0.0
    %590 = vmatpush1.msra.mxu0 0.0
    %591 = vmatprep.subr.mxu0 0.0
    %592 = vmatpush1.msra.mxu0 0.0
    %593 = vmatprep.subr.mxu0 0.0
    %594 = vmatpush1.msra.mxu0 0.0
    %595 = vmatprep.subr.mxu0 0.0
    %596 = vmatpush1.msra.mxu0 0.0
    %597 = vmatprep.subr.mxu0 0.0
    %598 = vmatpush1.msra.mxu0 0.0
    %599 = vmatprep.subr.mxu0 0.0
    %600 = vmatpush1.msra.mxu0 0.0
    %601 = vmatprep.subr.mxu0 0.0
    %602 = vmatpush1.msra.mxu0 0.0
    %603 = vmatprep.subr.mxu0 0.0
    %604 = vmatpush1.msra.mxu0 0.0
    %605 = vmatprep.subr.mxu0 0.0
    %606 = vmatpush1.msra.mxu0 0.0
    %607 = vmatprep.subr.mxu0 0.0
    %608 = vmatpush1.msra.mxu0 0.0
    %609 = vmatprep.subr.mxu0 0.0
    %610 = vmatpush1.msra.mxu0 0.0
    %611 = vmatprep.subr.mxu0 0.0
    %612 = vmatpush1.msra.mxu0 0.0
    %613 = vmatprep.subr.mxu0 0.0
    %614 = vmatpush1.msra.mxu0 0.0
    %615 = vmatprep.subr.mxu0 0.0
    %616 = vmatpush1.msra.mxu0 0.0
    %617 = vmatprep.subr.mxu0 0.0
    %618 = vmatpush1.msra.mxu0 0.0
    %619 = vmatprep.mubr.f32.mxu0 0.0
    %620 = vmatmul.mubr.f32.gmra.mrb[0].mxu0 %v530
    %v621 = vpop.f32.mrb[0].mxu0
    %v622 = vadd.f32 %v553, %v621
    %v623 = vpop.f32.mrb[0].mxu0
    %624 = vdwg.mxu0
    %v625 = vmax.f32 %v622, 0.0
    %s626 = scalar_lea.vmem [#allocation7], 128
    %v627 = vld [vmem:[%s626] sm:$0xff]
    %v628 = vld [vmem:[%s626 + $0x8] sm:$0xff]
    %v629 = vld [vmem:[%s626 + $0x10] sm:$0xff]
    %v630 = vld [vmem:[%s626 + $0x18] sm:$0xff]
    %v631 = vld [vmem:[%s626 + $0x20] sm:$0xff]
    %v632 = vld [vmem:[%s626 + $0x28] sm:$0xff]
    %v633 = vld [vmem:[%s626 + $0x30] sm:$0xff]
    %v634 = vld [vmem:[%s626 + $0x38] sm:$0xff]
    %v635 = vld [vmem:[%s626 + $0x40] sm:$0xff]
    %v636 = vld [vmem:[%s626 + $0x48] sm:$0xff]
    %v637 = vld [vmem:[%s626 + $0x50] sm:$0xff]
    %v638 = vld [vmem:[%s626 + $0x58] sm:$0xff]
    %v639 = vld [vmem:[%s626 + $0x60] sm:$0xff]
    %v640 = vld [vmem:[%s626 + $0x68] sm:$0xff]
    %v641 = vld [vmem:[%s626 + $0x70] sm:$0xff]
    %v642 = vld [vmem:[%s626 + $0x78] sm:$0xff]
    %s643 = scalar_lea.vmem %s6, 2
    %v644 = vld [vmem:[%s643] sm:$0x1]
    %v646 = vlaneseq
    %v647 = vshrl.u32 %v646, 7
    %v648 = vsub.s32 0, %v647
    %v649 = vrot.slane %v644, %v648
    %651 = vmatprep.subr.mxu0 0.0
    %652 = vmatpush1.msra.mxu0 %v627
    %653 = vmatprep.subr.mxu0 0.0
    %654 = vmatpush1.msra.mxu0 %v628
    %655 = vmatprep.subr.mxu0 0.0
    %656 = vmatpush1.msra.mxu0 %v629
    %657 = vmatprep.subr.mxu0 0.0
    %658 = vmatpush1.msra.mxu0 %v630
    %659 = vmatprep.subr.mxu0 0.0
    %660 = vmatpush1.msra.mxu0 %v631
    %661 = vmatprep.subr.mxu0 0.0
    %662 = vmatpush1.msra.mxu0 %v632
    %663 = vmatprep.subr.mxu0 0.0
    %664 = vmatpush1.msra.mxu0 %v633
    %665 = vmatprep.subr.mxu0 0.0
    %666 = vmatpush1.msra.mxu0 %v634
    %667 = vmatprep.subr.mxu0 0.0
    %668 = vmatpush1.msra.mxu0 %v635
    %669 = vmatprep.subr.mxu0 0.0
    %670 = vmatpush1.msra.mxu0 %v636
    %671 = vmatprep.subr.mxu0 0.0
    %672 = vmatpush1.msra.mxu0 %v637
    %673 = vmatprep.subr.mxu0 0.0
    %674 = vmatpush1.msra.mxu0 %v638
    %675 = vmatprep.subr.mxu0 0.0
    %676 = vmatpush1.msra.mxu0 %v639
    %677 = vmatprep.subr.mxu0 0.0
    %678 = vmatpush1.msra.mxu0 %v640
    %679 = vmatprep.subr.mxu0 0.0
    %680 = vmatpush1.msra.mxu0 %v641
    %681 = vmatprep.subr.mxu0 0.0
    %682 = vmatpush1.msra.mxu0 %v642
    %683 = vmatprep.subr.mxu0 0.0
    %684 = vmatpush1.msra.mxu0 0.0
    %685 = vmatprep.subr.mxu0 0.0
    %686 = vmatpush1.msra.mxu0 0.0
    %687 = vmatprep.subr.mxu0 0.0
    %688 = vmatpush1.msra.mxu0 0.0
    %689 = vmatprep.subr.mxu0 0.0
    %690 = vmatpush1.msra.mxu0 0.0
    %691 = vmatprep.subr.mxu0 0.0
    %692 = vmatpush1.msra.mxu0 0.0
    %693 = vmatprep.subr.mxu0 0.0
    %694 = vmatpush1.msra.mxu0 0.0
    %695 = vmatprep.subr.mxu0 0.0
    %696 = vmatpush1.msra.mxu0 0.0
    %697 = vmatprep.subr.mxu0 0.0
    %698 = vmatpush1.msra.mxu0 0.0
    %699 = vmatprep.subr.mxu0 0.0
    %700 = vmatpush1.msra.mxu0 0.0
    %701 = vmatprep.subr.mxu0 0.0
    %702 = vmatpush1.msra.mxu0 0.0
    %703 = vmatprep.subr.mxu0 0.0
    %704 = vmatpush1.msra.mxu0 0.0
    %705 = vmatprep.subr.mxu0 0.0
    %706 = vmatpush1.msra.mxu0 0.0
    %707 = vmatprep.subr.mxu0 0.0
    %708 = vmatpush1.msra.mxu0 0.0
    %709 = vmatprep.subr.mxu0 0.0
    %710 = vmatpush1.msra.mxu0 0.0
    %711 = vmatprep.subr.mxu0 0.0
    %712 = vmatpush1.msra.mxu0 0.0
    %713 = vmatprep.subr.mxu0 0.0
    %714 = vmatpush1.msra.mxu0 0.0
    %715 = vmatprep.mubr.f32.mxu0 0.0
    %716 = vmatmul.mubr.f32.gmra.mrb[0].mxu0 %v625
    %v717 = vpop.f32.mrb[0].mxu0
    %v718 = vadd.f32 %v649, %v717
    %v719 = vpop.f32.mrb[0].mxu0
    %720 = vdwg.mxu0
    %vm721 = vcmp.gt.f32.partialorder %v718, 0.0
    %v722 = vmul.f32 %v718, 0.01
    %v723 = vsel %vm721, %v718, %v722
    %s724 = scalar_lea.vmem [#allocation7], 256
    %v725 = vld [vmem:[%s724] sm:$0xff]
    %v726 = vld [vmem:[%s724 + $0x8] sm:$0xff]
    %v727 = vld [vmem:[%s724 + $0x10] sm:$0xff]
    %v728 = vld [vmem:[%s724 + $0x18] sm:$0xff]
    %v729 = vld [vmem:[%s724 + $0x20] sm:$0xff]
    %v730 = vld [vmem:[%s724 + $0x28] sm:$0xff]
    %v731 = vld [vmem:[%s724 + $0x30] sm:$0xff]
    %v732 = vld [vmem:[%s724 + $0x38] sm:$0xff]
    %v733 = vld [vmem:[%s724 + $0x40] sm:$0xff]
    %v734 = vld [vmem:[%s724 + $0x48] sm:$0xff]
    %v735 = vld [vmem:[%s724 + $0x50] sm:$0xff]
    %v736 = vld [vmem:[%s724 + $0x58] sm:$0xff]
    %v737 = vld [vmem:[%s724 + $0x60] sm:$0xff]
    %v738 = vld [vmem:[%s724 + $0x68] sm:$0xff]
    %v739 = vld [vmem:[%s724 + $0x70] sm:$0xff]
    %v740 = vld [vmem:[%s724 + $0x78] sm:$0xff]
    %s741 = scalar_lea.vmem %s6, 3
    %v742 = vld [vmem:[%s741] sm:$0x1]
    %v744 = vlaneseq
    %v745 = vshrl.u32 %v744, 7
    %v746 = vsub.s32 0, %v745
    %v747 = vrot.slane %v742, %v746
    %749 = vmatprep.subr.mxu0 0.0
    %750 = vmatpush1.msra.mxu0 %v725
    %751 = vmatprep.subr.mxu0 0.0
    %752 = vmatpush1.msra.mxu0 %v726
    %753 = vmatprep.subr.mxu0 0.0
    %754 = vmatpush1.msra.mxu0 %v727
    %755 = vmatprep.subr.mxu0 0.0
    %756 = vmatpush1.msra.mxu0 %v728
    %757 = vmatprep.subr.mxu0 0.0
    %758 = vmatpush1.msra.mxu0 %v729
    %759 = vmatprep.subr.mxu0 0.0
    %760 = vmatpush1.msra.mxu0 %v730
    %761 = vmatprep.subr.mxu0 0.0
    %762 = vmatpush1.msra.mxu0 %v731
    %763 = vmatprep.subr.mxu0 0.0
    %764 = vmatpush1.msra.mxu0 %v732
    %765 = vmatprep.subr.mxu0 0.0
    %766 = vmatpush1.msra.mxu0 %v733
    %767 = vmatprep.subr.mxu0 0.0
    %768 = vmatpush1.msra.mxu0 %v734
    %769 = vmatprep.subr.mxu0 0.0
    %770 = vmatpush1.msra.mxu0 %v735
    %771 = vmatprep.subr.mxu0 0.0
    %772 = vmatpush1.msra.mxu0 %v736
    %773 = vmatprep.subr.mxu0 0.0
    %774 = vmatpush1.msra.mxu0 %v737
    %775 = vmatprep.subr.mxu0 0.0
    %776 = vmatpush1.msra.mxu0 %v738
    %777 = vmatprep.subr.mxu0 0.0
    %778 = vmatpush1.msra.mxu0 %v739
    %779 = vmatprep.subr.mxu0 0.0
    %780 = vmatpush1.msra.mxu0 %v740
    %781 = vmatprep.subr.mxu0 0.0
    %782 = vmatpush1.msra.mxu0 0.0
    %783 = vmatprep.subr.mxu0 0.0
    %784 = vmatpush1.msra.mxu0 0.0
    %785 = vmatprep.subr.mxu0 0.0
    %786 = vmatpush1.msra.mxu0 0.0
    %787 = vmatprep.subr.mxu0 0.0
    %788 = vmatpush1.msra.mxu0 0.0
    %789 = vmatprep.subr.mxu0 0.0
    %790 = vmatpush1.msra.mxu0 0.0
    %791 = vmatprep.subr.mxu0 0.0
    %792 = vmatpush1.msra.mxu0 0.0
    %793 = vmatprep.subr.mxu0 0.0
    %794 = vmatpush1.msra.mxu0 0.0
    %795 = vmatprep.subr.mxu0 0.0
    %796 = vmatpush1.msra.mxu0 0.0
    %797 = vmatprep.subr.mxu0 0.0
    %798 = vmatpush1.msra.mxu0 0.0
    %799 = vmatprep.subr.mxu0 0.0
    %800 = vmatpush1.msra.mxu0 0.0
    %801 = vmatprep.subr.mxu0 0.0
    %802 = vmatpush1.msra.mxu0 0.0
    %803 = vmatprep.subr.mxu0 0.0
    %804 = vmatpush1.msra.mxu0 0.0
    %805 = vmatprep.subr.mxu0 0.0
    %806 = vmatpush1.msra.mxu0 0.0
    %807 = vmatprep.subr.mxu0 0.0
    %808 = vmatpush1.msra.mxu0 0.0
    %809 = vmatprep.subr.mxu0 0.0
    %810 = vmatpush1.msra.mxu0 0.0
    %811 = vmatprep.subr.mxu0 0.0
    %812 = vmatpush1.msra.mxu0 0.0
    %813 = vmatprep.mubr.f32.mxu0 0.0
    %814 = vmatmul.mubr.f32.gmra.mrb[0].mxu0 %v723
    %v815 = vpop.f32.mrb[0].mxu0
    %v816 = vadd.f32 %v747, %v815
    %v817 = vpop.f32.mrb[0].mxu0
    %818 = vdwg.mxu0
    %v819 = vmax.f32 %v816, 0.0
    %s820 = scalar_lea.vmem %s6, 5
    %v821 = vld [vmem:[%s820] sm:$0x1]
    %v823 = vlaneseq
    %v824 = vshrl.u32 %v823, 7
    %v825 = vsub.s32 0, %v824
    %v826 = vrot.slane %v821, %v825
    %v828 = vmul.f32 %v819, %v826
    %829 = vadd.xlane.f32.xlu0 %v828
    %v830 = vpop.xlane.xlu0 %829
    %s831 = scalar_lea.vmem %s6, 6
    %v832 = vld [vmem:[%s831] sm:$0x1]
    %v834 = vlaneseq
    %v835 = vshrl.u32 %v834, 7
    %v836 = vsub.s32 0, %v835
    %v837 = vrot.slane %v832, %v836
    %v839 = vadd.f32 %v830, %v837
    %vm840 = vcmask 7168
    %841 = vst.msk [vmem:[%s7] sm:$0xff] %vm840, %v839
    // Predicated region
    $region42: #{tpu_custom_call.1} parent=1 // pred_check
      _
    $region43: #{tpu_custom_call.1} parent=1 // pred_check_branch
      %843 = sbr.rel (0) target = $region45
    $region44: #{tpu_custom_call.1} parent=1 // pred_region
      _
    $region45: #{tpu_custom_call.1} parent=1 // pred_fallthru
      _
    // Predicated region
    $region46: #{tpu_custom_call.1} parent=1 // pred_check
      _
    $region47: #{tpu_custom_call.1} parent=1 // pred_check_branch
      %845 = sbr.rel (0) target = $region49
    $region48: #{tpu_custom_call.1} parent=1 // pred_region
      %s847 = ssub.s32 128, 128
      %848 = vsyncadd [#allocation4], %s847
      %s850 = sshll.u32 [#allocation8], 4
      %s851 = int_to_ptr.vmem [resolvable:$true] %s850
      %853 = dma.vmem_to_hbm [thread:$0]  %s851, 128, %s8, [#allocation4]
    $region49: #{tpu_custom_call.1} parent=1 // pred_fallthru
      _
    // Predicated region
    $region50: #{tpu_custom_call.1} parent=1 // pred_check
      _
    $region51: #{tpu_custom_call.1} parent=1 // pred_check_branch
      %855 = sbr.rel (0) target = $region53
    $region52: #{tpu_custom_call.1} parent=1 // pred_region
      _
    $region53: #{tpu_custom_call.1} parent=1 // pred_fallthru
      _
    // Predicated region
    $region54: #{tpu_custom_call.1} parent=1 // pred_check
      _
    $region55: #{tpu_custom_call.1} parent=1 // pred_check_branch
      %857 = sbr.rel (0) target = $region57
    $region56: #{tpu_custom_call.1} parent=1 // pred_region
      %858 = dma.done [#allocation4], 128
    $region57: #{tpu_custom_call.1} parent=1 // pred_fallthru
      _
    %859 = vsyncpa [#allocation3], 1
    %860 = vsyncpa [#allocation6], 1
    %861 = vsyncpa [#allocation4], 1

</llo_original>
